<compile_context>
chip_gen: v6e
topology: v6e:2x2x1
jax: 0.10.0
libtpu: 0.0.40
codegen_flags: <defaults>
</compile_context>

<pallas_src>
import functools

import jax
import jax.numpy as jnp
from jax.experimental import pallas as pl
from jax.experimental.pallas import tpu as pltpu

HIDDEN1 = 384
HIDDEN2 = 128
NEG_SLOPE = 0.2


def _leaky_relu(x, slope=NEG_SLOPE):
    return jnp.where(x > 0, x, slope * x)


def flatten_head_kernel(x_ref, w1_ref, b1_ref, w2_ref, b2_ref, w3_ref, b3_ref, o_ref):
    # One row-tile of the flattened (B*N, d_model) input. All three Linear layers
    # + LeakyReLU are fused; matmul operands are bf16, accumulation is f32.
    # Cast the f32 tile to bf16 in-register (VPU has slack); keeps input HBM
    # traffic at 4B/elem instead of an extra wrapper-side cast pass.
    x = x_ref[...].astype(jnp.bfloat16)  # (tm, d_model)

    h1 = jnp.dot(x, w1_ref[...], preferred_element_type=jnp.float32) + b1_ref[...]
    h1 = _leaky_relu(h1)
    # Dropout(0.25) -> identity in inference mode.

    h2 = jnp.dot(h1.astype(jnp.bfloat16), w2_ref[...],
                 preferred_element_type=jnp.float32) + b2_ref[...]
    h2 = _leaky_relu(h2)
    # Dropout(0.25) -> identity in inference mode.

    h3 = jnp.dot(h2.astype(jnp.bfloat16), w3_ref[...],
                 preferred_element_type=jnp.float32) + b3_ref[...]
    # TODO(synk): if profiling on v5e shows the single vst slot binding (Tstep<128
    # -> masked stores), relayout h3 to a lane-dense (tm*Tstep//128, 128) slab.
    o_ref[...] = h3.astype(o_ref.dtype)


def _round_up(v, m):
    return ((v + m - 1) // m) * m


def _vmem_limit_bytes(tm, d_model, Tstep):
    bf16, f32 = 2, 4
    x_io = 2 * tm * d_model * f32                    # double-buffered f32 input tile
    o_io = 2 * tm * Tstep * f32                      # double-buffered output tile
    wgt = (d_model * HIDDEN1 + HIDDEN1 * HIDDEN2 + HIDDEN2 * Tstep) * bf16
    bias = (HIDDEN1 + HIDDEN2 + Tstep) * f32
    interm = tm * (HIDDEN1 + HIDDEN2 + Tstep) * f32  # h1/h2/h3 live values
    est = x_io + o_io + wgt + bias + interm
    # Cap at 50% of the chip's physical VMEM (v7x: 64 MiB -> 32 MiB cap);
    # fall back to a conservative 32 MiB if the query is unavailable.
    try:
        info = pltpu.get_tpu_info()
        cap = getattr(info, "vmem_capacity_bytes", 64 * 1024 * 1024) // 2
    except Exception:  # pragma: no cover - hardware-query fallback
        cap = 32 * 1024 * 1024
    cap = max(cap, 16 * 1024 * 1024)
    return int(min(max(2 * est, 16 * 1024 * 1024), cap))


@functools.partial(jax.jit, static_argnames=("tm",))
def flatten_head(x, params, *, tm=1024):
    """x: (B, N, d_model) f32 -> (B, N, Tstep). Dropout layers are inference-mode identity.

    `params` must come from prepare_params() (bf16 weights, f32 biases) so the
    dtype casts are a one-time cost outside this hot path.
    """
    w1b, b1f, w2b, b2f, w3b, b3f = params
    B, N, d_model = x.shape
    Tstep = w3b.shape[1]

    M = B * N
    # Largest row tile <= tm that covers M, rounded to a multiple of 16
    # (bf16 sublane packing); keep >= 2 grid steps when there are enough rows
    # so v7x's two TensorCores both get work.
    tm_eff = min(tm, _round_up(M, 16))
    if M > 32:
        tm_eff = min(tm_eff, max(16, _round_up(pl.cdiv(M, 2), 16)))
    grid = (pl.cdiv(M, tm_eff),)

    x2 = x.reshape(M, d_model)  # stays f32; cast to bf16 happens inside the kernel

    # Weights/biases: full-array, untiled VMEM residents (single-buffered).
    # TODO(synk): if d_model grows so W1 is many MiB, add a K-reduction grid axis
    # with an f32 VMEM accumulator for the first matmul instead of holding W1 resident.
    resident = pl.BlockSpec(memory_space=pltpu.MemorySpace.VMEM)

    out = pl.pallas_call(
        flatten_head_kernel,
        out_shape=jax.ShapeDtypeStruct((M, Tstep), x.dtype),
        grid_spec=pltpu.PrefetchScalarGridSpec(
            num_scalar_prefetch=0,
            grid=grid,
            in_specs=[
                pl.BlockSpec((tm_eff, d_model), lambda i: (i, 0)),  # x row tile (f32)
                resident,  # W1 (bf16)
                resident,  # b1 (f32)
                resident,  # W2 (bf16)
                resident,  # b2 (f32)
                resident,  # W3 (bf16)
                resident,  # b3 (f32)
            ],
            out_specs=pl.BlockSpec((tm_eff, Tstep), lambda i: (i, 0)),
        ),
        compiler_params=pltpu.CompilerParams(
            dimension_semantics=("parallel",),
            vmem_limit_bytes=_vmem_limit_bytes(tm_eff, d_model, Tstep),
        ),
    )(x2, w1b, b1f, w2b, b2f, w3b, b3f)

    return out.reshape(B, N, Tstep)


def init_params(key, d_model, Tstep, dtype=jnp.float32):
    """Deterministic init mimicking nn.Linear default (uniform +/- 1/sqrt(fan_in)).
    Weights stored as (in_features, out_features)."""
    def linear(k, fan_in, fan_out):
        kw, kb = jax.random.split(k)
        bound = 1.0 / (fan_in ** 0.5)
        w = jax.random.uniform(kw, (fan_in, fan_out), dtype, -bound, bound)
        b = jax.random.uniform(kb, (1, fan_out), dtype, -bound, bound)
        return w, b

    k1, k2, k3 = jax.random.split(key, 3)
    w1, b1 = linear(k1, d_model, HIDDEN1)
    w2, b2 = linear(k2, HIDDEN1, HIDDEN2)
    w3, b3 = linear(k3, HIDDEN2, Tstep)
    return (w1, b1, w2, b2, w3, b3)


def prepare_params(params):
    """One-time dtype prep (outside the jitted hot path): bf16 weights for the MXU,
    f32 biases added post-accumulation."""
    w1, b1, w2, b2, w3, b3 = params
    return (
        w1.astype(jnp.bfloat16), b1.astype(jnp.float32),
        w2.astype(jnp.bfloat16), b2.astype(jnp.float32),
        w3.astype(jnp.bfloat16), b3.astype(jnp.float32),
    )


def flatten_head_ref(x, params):
    """Pure-JAX f32 reference (matches the PyTorch module in eval mode)."""
    w1, b1, w2, b2, w3, b3 = params
    B, N, d = x.shape
    h = x.reshape(B * N, d).astype(jnp.float32)
    h = _leaky_relu(h @ w1 + b1)
    h = _leaky_relu(h @ w2 + b2)
    h = h @ w3 + b3
    return h.reshape(B, N, -1).astype(x.dtype)


if __name__ == "__main__":
    B, N, d_model, Tstep = 2, 8, 32, 8

    key = jax.random.PRNGKey(0)
    kx, kp = jax.random.split(key)
    x = jax.random.normal(kx, (B, N, d_model), dtype=jnp.float32)

    params_f32 = init_params(kp, d_model, Tstep)
    params = prepare_params(params_f32)  # one-time cast, hoisted out of the hot path

    out = flatten_head(x, params)
    out = jax.block_until_ready(out)

    ref = flatten_head_ref(x, params_f32)
    assert out.shape == (B, N, Tstep), out.shape
    # bf16 MXU operands (f32 accumulation) vs f32 reference -> relaxed tolerance.
    assert jnp.allclose(out, ref, atol=5e-2, rtol=5e-2), "mismatch vs reference"

    print("KERNEL_OK")
</pallas_src>

<mosaic_0001>
module attributes {stable_mosaic.version = 11 : i64} {
  func.func @flatten_head_kernel(%arg0: i32, %arg1: memref<16x32xf32, #tpu.memory_space<vmem>>, %arg2: memref<32x384xbf16, #tpu.memory_space<vmem>>, %arg3: memref<1x384xf32, #tpu.memory_space<vmem>>, %arg4: memref<384x128xbf16, #tpu.memory_space<vmem>>, %arg5: memref<1x128xf32, #tpu.memory_space<vmem>>, %arg6: memref<128x8xbf16, #tpu.memory_space<vmem>>, %arg7: memref<1x8xf32, #tpu.memory_space<vmem>>, %arg8: memref<16x8xf32, #tpu.memory_space<vmem>>) attributes {dimension_semantics = [#tpu.dimension_semantics<parallel>], iteration_bounds = array<i64: 1>, scalar_prefetch = 0 : i64, scratch_operands = 0 : i64, tpu.core_type = #tpu.core_type<tc>, window_params = [{transform_indices = @transform_0, window_bounds = array<i64: 16, 32>}, {pipeline_mode = #tpu.pipeline_mode<synchronous>, transform_indices = @transform_1, window_bounds = array<i64: 32, 384>}, {pipeline_mode = #tpu.pipeline_mode<synchronous>, transform_indices = @transform_2, window_bounds = array<i64: 1, 384>}, {pipeline_mode = #tpu.pipeline_mode<synchronous>, transform_indices = @transform_3, window_bounds = array<i64: 384, 128>}, {pipeline_mode = #tpu.pipeline_mode<synchronous>, transform_indices = @transform_4, window_bounds = array<i64: 1, 128>}, {pipeline_mode = #tpu.pipeline_mode<synchronous>, transform_indices = @transform_5, window_bounds = array<i64: 128, 8>}, {pipeline_mode = #tpu.pipeline_mode<synchronous>, transform_indices = @transform_6, window_bounds = array<i64: 1, 8>}, {transform_indices = @transform_7, window_bounds = array<i64: 16, 8>}]} {
    %c0 = arith.constant 0 : index
    %c0_0 = arith.constant 0 : index
    %0 = vector.load %arg1[%c0, %c0_0] : memref<16x32xf32, #tpu.memory_space<vmem>>, vector<16x32xf32>
    %1 = arith.truncf %0 : vector<16x32xf32> to vector<16x32xbf16>
    %c0_1 = arith.constant 0 : index
    %c0_2 = arith.constant 0 : index
    %2 = vector.load %arg2[%c0_1, %c0_2] : memref<32x384xbf16, #tpu.memory_space<vmem>>, vector<32x384xbf16>
    %cst = arith.constant dense<0.000000e+00> : vector<16x384xf32>
    %3 = tpu.matmul %1, %2, %cst {dimension_numbers = #tpu.dot_dimension_numbers<[1], [0], [0], [1], [0, 0, 1, 1], [], []>} : vector<16x32xbf16>, vector<32x384xbf16>, vector<16x384xf32> -> vector<16x384xf32>
    %c0_3 = arith.constant 0 : index
    %c0_4 = arith.constant 0 : index
    %4 = vector.load %arg3[%c0_3, %c0_4] : memref<1x384xf32, #tpu.memory_space<vmem>>, vector<1x384xf32>
    %5 = vector.broadcast %4 : vector<1x384xf32> to vector<16x384xf32>
    %6 = arith.addf %3, %5 : vector<16x384xf32>
    %cst_5 = arith.constant 0.000000e+00 : f32
    %7 = vector.broadcast %cst_5 : f32 to vector<16x384xf32>
    %8 = arith.cmpf ogt, %6, %7 : vector<16x384xf32>
    %cst_6 = arith.constant 2.000000e-01 : f32
    %9 = vector.broadcast %cst_6 : f32 to vector<16x384xf32>
    %10 = arith.mulf %9, %6 : vector<16x384xf32>
    %11 = arith.select %8, %6, %10 : vector<16x384xi1>, vector<16x384xf32>
    %12 = arith.truncf %11 : vector<16x384xf32> to vector<16x384xbf16>
    %c0_7 = arith.constant 0 : index
    %c0_8 = arith.constant 0 : index
    %13 = vector.load %arg4[%c0_7, %c0_8] : memref<384x128xbf16, #tpu.memory_space<vmem>>, vector<384x128xbf16>
    %cst_9 = arith.constant dense<0.000000e+00> : vector<16x128xf32>
    %14 = tpu.matmul %12, %13, %cst_9 {dimension_numbers = #tpu.dot_dimension_numbers<[1], [0], [0], [1], [0, 0, 1, 1], [], []>} : vector<16x384xbf16>, vector<384x128xbf16>, vector<16x128xf32> -> vector<16x128xf32>
    %c0_10 = arith.constant 0 : index
    %c0_11 = arith.constant 0 : index
    %15 = vector.load %arg5[%c0_10, %c0_11] : memref<1x128xf32, #tpu.memory_space<vmem>>, vector<1x128xf32>
    %16 = vector.broadcast %15 : vector<1x128xf32> to vector<16x128xf32>
    %17 = arith.addf %14, %16 : vector<16x128xf32>
    %cst_12 = arith.constant 0.000000e+00 : f32
    %18 = vector.broadcast %cst_12 : f32 to vector<16x128xf32>
    %19 = arith.cmpf ogt, %17, %18 : vector<16x128xf32>
    %cst_13 = arith.constant 2.000000e-01 : f32
    %20 = vector.broadcast %cst_13 : f32 to vector<16x128xf32>
    %21 = arith.mulf %20, %17 : vector<16x128xf32>
    %22 = arith.select %19, %17, %21 : vector<16x128xi1>, vector<16x128xf32>
    %23 = arith.truncf %22 : vector<16x128xf32> to vector<16x128xbf16>
    %c0_14 = arith.constant 0 : index
    %c0_15 = arith.constant 0 : index
    %24 = vector.load %arg6[%c0_14, %c0_15] : memref<128x8xbf16, #tpu.memory_space<vmem>>, vector<128x8xbf16>
    %cst_16 = arith.constant dense<0.000000e+00> : vector<16x8xf32>
    %25 = tpu.matmul %23, %24, %cst_16 {dimension_numbers = #tpu.dot_dimension_numbers<[1], [0], [0], [1], [0, 0, 1, 1], [], []>} : vector<16x128xbf16>, vector<128x8xbf16>, vector<16x8xf32> -> vector<16x8xf32>
    %c0_17 = arith.constant 0 : index
    %c0_18 = arith.constant 0 : index
    %26 = vector.load %arg7[%c0_17, %c0_18] : memref<1x8xf32, #tpu.memory_space<vmem>>, vector<1x8xf32>
    %27 = vector.broadcast %26 : vector<1x8xf32> to vector<16x8xf32>
    %28 = arith.addf %25, %27 : vector<16x8xf32>
    %c0_19 = arith.constant 0 : index
    %c0_20 = arith.constant 0 : index
    %29 = vector.load %arg8[%c0_19, %c0_20] : memref<16x8xf32, #tpu.memory_space<vmem>>, vector<16x8xf32>
    tpu.vector_store %arg8[%c0_19, %c0_20], %28 {strides = array<i32>} : memref<16x8xf32, #tpu.memory_space<vmem>>, vector<16x8xf32>,
    return
  }
  func.func @transform_0(%arg0: i32) -> (i32, i32) {
    %c0_i32 = arith.constant 0 : i32
    %c0_i32_0 = arith.constant 0 : i32
    return %arg0, %c0_i32 : i32, i32
  }
  func.func @transform_1(%arg0: i32) -> (i32, i32) {
    %c0_i32 = arith.constant 0 : i32
    %c0_i32_0 = arith.constant 0 : i32
    %c0_i32_1 = arith.constant 0 : i32
    return %c0_i32, %c0_i32_0 : i32, i32
  }
  func.func @transform_2(%arg0: i32) -> (i32, i32) {
    %c0_i32 = arith.constant 0 : i32
    %c0_i32_0 = arith.constant 0 : i32
    %c0_i32_1 = arith.constant 0 : i32
    return %c0_i32, %c0_i32_0 : i32, i32
  }
  func.func @transform_3(%arg0: i32) -> (i32, i32) {
    %c0_i32 = arith.constant 0 : i32
    %c0_i32_0 = arith.constant 0 : i32
    %c0_i32_1 = arith.constant 0 : i32
    return %c0_i32, %c0_i32_0 : i32, i32
  }
  func.func @transform_4(%arg0: i32) -> (i32, i32) {
    %c0_i32 = arith.constant 0 : i32
    %c0_i32_0 = arith.constant 0 : i32
    %c0_i32_1 = arith.constant 0 : i32
    return %c0_i32, %c0_i32_0 : i32, i32
  }
  func.func @transform_5(%arg0: i32) -> (i32, i32) {
    %c0_i32 = arith.constant 0 : i32
    %c0_i32_0 = arith.constant 0 : i32
    %c0_i32_1 = arith.constant 0 : i32
    return %c0_i32, %c0_i32_0 : i32, i32
  }
  func.func @transform_6(%arg0: i32) -> (i32, i32) {
    %c0_i32 = arith.constant 0 : i32
    %c0_i32_0 = arith.constant 0 : i32
    %c0_i32_1 = arith.constant 0 : i32
    return %c0_i32, %c0_i32_0 : i32, i32
  }
  func.func @transform_7(%arg0: i32) -> (i32, i32) {
    %c0_i32 = arith.constant 0 : i32
    %c0_i32_0 = arith.constant 0 : i32
    return %arg0, %c0_i32 : i32, i32
  }
}

</mosaic_0001>

<llo_original>
// kernel: flatten_head.1
$region0: #{flatten_head.1}
  #allocation0 [shape = 'u32[]', space=smem, size = 0x4, offset = 0x4, fixed_abs, tag = 'smem constant byte address 0x4 - core index']
  #allocation1 [shape = 'u32[144,128]{1,0:T(1,128)}', space=vmem, size = 0x12000, scoped, tag = 'internal scratch']
  %s0 = inlined_call_operand.vmem [shape: f32[16,32], index: 0, kind: input, shape index: {}]
  %s1 = inlined_call_operand.vmem [shape: bf16[32,384], index: 1, kind: input, shape index: {}]
  %s2 = inlined_call_operand.vmem [shape: f32[1,384], index: 2, kind: input, shape index: {}]
  %s3 = inlined_call_operand.hbm [shape: bf16[384,128], index: 3, kind: input, shape index: {}]
  %s4 = inlined_call_operand.vmem [shape: f32[1,128], index: 4, kind: input, shape index: {}]
  %s5 = inlined_call_operand.vmem [shape: bf16[128,8], index: 5, kind: input, shape index: {}]
  %s6 = inlined_call_operand.vmem [shape: f32[1,8], index: 6, kind: input, shape index: {}]
  %s7 = inlined_call_operand.hbm [shape: f32[16,8], index: 7, kind: output, shape index: {}]
  %s8 = sld [smem:[#allocation0]]
  $region42: #{flatten_head.1} parent=0
    _
  %s10 = ssub.s32 1, %s8
  %s11 = scalar_select 0, %s10, %s8
  $region1: #{flatten_head.1} parent=0
    #allocation2 [shape = 'u8[98304]{0}', space=vmem, size = 0x18000, scoped, tag = 'input window, operand 3, single buffered']
    #allocation3 [shape = 's32[1]{0}', space=sflag, size = 0x4, scoped, tag = 'scoped memory for flatten_head.1']
    #allocation4 [shape = 's32[1]{0}', space=sflag, size = 0x4, scoped, tag = 'scoped memory for flatten_head.1']
    #allocation5 [shape = 'u8[8192]{0}', space=vmem, size = 0x2000, scoped, tag = 'output window, operand 0, single buffered']
    %12 = vsyncpa [#allocation3], 0
    %13 = vsyncpa [#allocation4], 0
    // Predicated region
    $region2: #{flatten_head.1} parent=1 // pred_check
      _
    $region3: #{flatten_head.1} parent=1 // pred_check_branch
      %15 = sbr.rel (0) target = $region5
    $region4: #{flatten_head.1} parent=1 // pred_region
      _
    $region5: #{flatten_head.1} parent=1 // pred_fallthru
      _
    // Predicated region
    $region6: #{flatten_head.1} parent=1 // pred_check
      _
    $region7: #{flatten_head.1} parent=1 // pred_check_branch
      %17 = sbr.rel (0) target = $region9
    $region8: #{flatten_head.1} parent=1 // pred_region
      _
    $region9: #{flatten_head.1} parent=1 // pred_fallthru
      _
    // Predicated region
    $region10: #{flatten_head.1} parent=1 // pred_check
      _
    $region11: #{flatten_head.1} parent=1 // pred_check_branch
      %19 = sbr.rel (0) target = $region13
    $region12: #{flatten_head.1} parent=1 // pred_region
      _
    $region13: #{flatten_head.1} parent=1 // pred_fallthru
      _
    // Predicated region
    $region14: #{flatten_head.1} parent=1 // pred_check
      _
    $region15: #{flatten_head.1} parent=1 // pred_check_branch
      %21 = sbr.rel (0) target = $region17
    $region16: #{flatten_head.1} parent=1 // pred_region
      %s23 = ssub.s32 3072, 3072
      %24 = vsyncadd [#allocation3], %s23
      %s25 = sshll.u32 [#allocation2], 4
      %s26 = int_to_ptr.vmem [resolvable:$true] %s25
      %31 = dma.hbm_to_vmem [thread:$0]  %s3, 3072, %s26, [#allocation3], 64, 64, 4
    $region17: #{flatten_head.1} parent=1 // pred_fallthru
      _
    // Predicated region
    $region18: #{flatten_head.1} parent=1 // pred_check
      _
    $region19: #{flatten_head.1} parent=1 // pred_check_branch
      %33 = sbr.rel (0) target = $region21
    $region20: #{flatten_head.1} parent=1 // pred_region
      _
    $region21: #{flatten_head.1} parent=1 // pred_fallthru
      _
    // Predicated region
    $region22: #{flatten_head.1} parent=1 // pred_check
      _
    $region23: #{flatten_head.1} parent=1 // pred_check_branch
      %35 = sbr.rel (0) target = $region25
    $region24: #{flatten_head.1} parent=1 // pred_region
      _
    $region25: #{flatten_head.1} parent=1 // pred_fallthru
      _
    // Predicated region
    $region26: #{flatten_head.1} parent=1 // pred_check
      _
    $region27: #{flatten_head.1} parent=1 // pred_check_branch
      %37 = sbr.rel (0) target = $region29
    $region28: #{flatten_head.1} parent=1 // pred_region
      _
    $region29: #{flatten_head.1} parent=1 // pred_fallthru
      _
    // Predicated region
    $region30: #{flatten_head.1} parent=1 // pred_check
      _
    $region31: #{flatten_head.1} parent=1 // pred_check_branch
      %39 = sbr.rel (0) target = $region33
    $region32: #{flatten_head.1} parent=1 // pred_region
      %40 = dma.done [#allocation3], 3072
    $region33: #{flatten_head.1} parent=1 // pred_fallthru
      _
    %v42 = vld [vmem:[%s0] sm:$0xff]
    %v43 = vld [vmem:[%s0 + $0x8] sm:$0xff]
    %v44 = vpack.c.bf16 %v43, %v42
    %v45 = vld [vmem:[%s1] sm:$0xff]
    %v46 = vld [vmem:[%s1 + $0x8] sm:$0xf]
    %v47 = vld [vmem:[%s1 + $0xc] sm:$0xff]
    %v48 = vld [vmem:[%s1 + $0x14] sm:$0xf]
    %v49 = vld [vmem:[%s1 + $0x18] sm:$0xff]
    %v50 = vld [vmem:[%s1 + $0x20] sm:$0xf]
    %v51 = vld [vmem:[%s1 + $0x24] sm:$0xff]
    %v52 = vld [vmem:[%s1 + $0x2c] sm:$0xf]
    %v53 = vld [vmem:[%s2] sm:$0x7]
    %v55 = vlaneseq
    %v56 = vshrl.u32 %v55, 7
    %v57 = vsub.s32 0, %v56
    %v58 = vrot.slane %v53, %v57
    %v59 = vlaneseq
    %v60 = vshrl.u32 %v59, 7
    %v61 = vsub.s32 1, %v60
    %v62 = vrot.slane %v53, %v61
    %v63 = vlaneseq
    %v64 = vshrl.u32 %v63, 7
    %v65 = vsub.s32 2, %v64
    %v66 = vrot.slane %v53, %v65
    %v78 = vunpack.c.l.b16 %v45
    %v79 = vunpack.c.h.b16 %v45
    %v80 = vunpack.c.l.b16 %v46
    %v81 = vunpack.c.l.b16 %v47
    %v82 = vunpack.c.h.b16 %v47
    %v83 = vunpack.c.l.b16 %v48
    %v84 = vunpack.c.l.b16 %v49
    %v85 = vunpack.c.h.b16 %v49
    %v86 = vunpack.c.l.b16 %v50
    %v87 = vunpack.c.l.b16 %v51
    %v88 = vunpack.c.h.b16 %v51
    %v89 = vunpack.c.l.b16 %v52
    %v90 = vpack.c.b16 %v81, %v78
    %v91 = vpack.c.b16 %v82, %v79
    %v92 = vpack.c.b16 %v83, %v80
    %v93 = vpack.c.b16 %v87, %v84
    %v94 = vpack.c.b16 %v88, %v85
    %v95 = vpack.c.b16 %v89, %v86
    %vm102 = vcmask 261120
    %v104 = vsel %vm102, %v44, 0
    %106 = vmatprep.subr.bf16.mxu0 0
    %107 = vmatpush1.bf16.msra.mxu0 0
    %108 = vmatprep.subr.bf16.mxu0 0
    %109 = vmatpush1.bf16.msra.mxu0 0
    %110 = vmatprep.subr.bf16.mxu0 0
    %111 = vmatpush1.bf16.msra.mxu0 0
    %112 = vmatprep.subr.bf16.mxu0 0
    %113 = vmatpush1.bf16.msra.mxu0 0
    %114 = vmatprep.subr.bf16.mxu0 0
    %115 = vmatpush1.bf16.msra.mxu0 0
    %116 = vmatprep.subr.bf16.mxu0 0
    %117 = vmatpush1.bf16.msra.mxu0 0
    %118 = vmatprep.subr.bf16.mxu0 %v94
    %119 = vmatpush1.bf16.msra.mxu0 %v93
    %120 = vmatprep.subr.bf16.mxu0 %v91
    %121 = vmatpush1.bf16.msra.mxu0 %v90
    %122 = vmatprep.subr.bf16.mxu0 0
    %123 = vmatpush2.bf16.msra.mxu0 0
    %124 = vmatprep.subr.bf16.mxu0 0
    %125 = vmatpush2.bf16.msra.mxu0 0
    %126 = vmatprep.subr.bf16.mxu0 0
    %127 = vmatpush2.bf16.msra.mxu0 0
    %128 = vmatprep.subr.bf16.mxu0 0
    %129 = vmatpush2.bf16.msra.mxu0 0
    %130 = vmatprep.subr.bf16.mxu0 0
    %131 = vmatpush2.bf16.msra.mxu0 0
    %132 = vmatprep.subr.bf16.mxu0 0
    %133 = vmatpush2.bf16.msra.mxu0 0
    %134 = vmatprep.subr.bf16.mxu0 0
    %135 = vmatpush2.bf16.msra.mxu0 0
    %136 = vmatprep.subr.bf16.mxu0 0
    %137 = vmatpush2.bf16.msra.mxu0 0
    %138 = vmatprep.mubr.bf16.mxu0 0
    %139 = vmatmul.mubr.bf16.gmra.mxu0 %v104
    %v140 = vpop.f32.mrf.mxu0
    %v141 = vadd.f32 %v58, %v140
    %v142 = vpop.f32.mrf.mxu0
    %v143 = vadd.f32 %v62, %v142
    %v144 = vpop.f32.mrf.mxu0
    %v145 = vadd.f32 %v58, %v144
    %v146 = vpop.f32.mrf.mxu0
    %v147 = vadd.f32 %v62, %v146
    %148 = vdwg.mxu0
    %149 = vmatprep.subr.bf16.mxu0 0
    %150 = vmatpush1.bf16.msra.mxu0 0
    %151 = vmatprep.subr.bf16.mxu0 0
    %152 = vmatpush1.bf16.msra.mxu0 0
    %153 = vmatprep.subr.bf16.mxu0 0
    %154 = vmatpush1.bf16.msra.mxu0 0
    %155 = vmatprep.subr.bf16.mxu0 0
    %156 = vmatpush1.bf16.msra.mxu0 0
    %157 = vmatprep.subr.bf16.mxu0 0
    %158 = vmatpush1.bf16.msra.mxu0 0
    %159 = vmatprep.subr.bf16.mxu0 0
    %160 = vmatpush1.bf16.msra.mxu0 0
    %161 = vmatprep.subr.bf16.mxu0 0
    %162 = vmatpush1.bf16.msra.mxu0 %v95
    %163 = vmatprep.subr.bf16.mxu0 0
    %164 = vmatpush1.bf16.msra.mxu0 %v92
    %165 = vmatprep.subr.bf16.mxu0 0
    %166 = vmatpush2.bf16.msra.mxu0 0
    %167 = vmatprep.subr.bf16.mxu0 0
    %168 = vmatpush2.bf16.msra.mxu0 0
    %169 = vmatprep.subr.bf16.mxu0 0
    %170 = vmatpush2.bf16.msra.mxu0 0
    %171 = vmatprep.subr.bf16.mxu0 0
    %172 = vmatpush2.bf16.msra.mxu0 0
    %173 = vmatprep.subr.bf16.mxu0 0
    %174 = vmatpush2.bf16.msra.mxu0 0
    %175 = vmatprep.subr.bf16.mxu0 0
    %176 = vmatpush2.bf16.msra.mxu0 0
    %177 = vmatprep.subr.bf16.mxu0 0
    %178 = vmatpush2.bf16.msra.mxu0 0
    %179 = vmatprep.subr.bf16.mxu0 0
    %180 = vmatpush2.bf16.msra.mxu0 0
    %181 = vmatprep.mubr.bf16.mxu0 0
    %182 = vmatmul.mubr.bf16.gmra.mxu0 %v104
    %v183 = vpop.f32.mrf.mxu0
    %v184 = vadd.f32 %v66, %v183
    %v185 = vpop.f32.mrf.mxu0
    %v186 = vpop.f32.mrf.mxu0
    %v187 = vadd.f32 %v66, %v186
    %v188 = vpop.f32.mrf.mxu0
    %189 = vdwg.mxu0
    %vm190 = vcmp.gt.f32.partialorder %v141, 0.0
    %vm191 = vcmp.gt.f32.partialorder %v143, 0.0
    %vm192 = vcmp.gt.f32.partialorder %v184, 0.0
    %vm193 = vcmp.gt.f32.partialorder %v145, 0.0
    %vm194 = vcmp.gt.f32.partialorder %v147, 0.0
    %vm195 = vcmp.gt.f32.partialorder %v187, 0.0
    %v196 = vmul.f32 %v141, 0.2
    %v197 = vmul.f32 %v143, 0.2
    %v198 = vmul.f32 %v184, 0.2
    %v199 = vmul.f32 %v145, 0.2
    %v200 = vmul.f32 %v147, 0.2
    %v201 = vmul.f32 %v187, 0.2
    %v202 = vsel %vm190, %v141, %v196
    %v203 = vsel %vm191, %v143, %v197
    %v204 = vsel %vm192, %v184, %v198
    %v205 = vsel %vm193, %v145, %v199
    %v206 = vsel %vm194, %v147, %v200
    %v207 = vsel %vm195, %v187, %v201
    %v208 = vpack.c.bf16 %v205, %v202
    %v209 = vpack.c.bf16 %v206, %v203
    %v210 = vpack.c.bf16 %v207, %v204
    %v211 = vld [vmem:[#allocation2] sm:$0xf]
    %v212 = vld [vmem:[#allocation2 + $0x4] sm:$0xf]
    %v213 = vld [vmem:[#allocation2 + $0x8] sm:$0xf]
    %v214 = vld [vmem:[#allocation2 + $0xc] sm:$0xf]
    %v215 = vld [vmem:[#allocation2 + $0x10] sm:$0xf]
    %v216 = vld [vmem:[#allocation2 + $0x14] sm:$0xf]
    %v217 = vld [vmem:[#allocation2 + $0x18] sm:$0xf]
    %v218 = vld [vmem:[#allocation2 + $0x1c] sm:$0xf]
    %v219 = vld [vmem:[#allocation2 + $0x20] sm:$0xf]
    %v220 = vld [vmem:[#allocation2 + $0x24] sm:$0xf]
    %v221 = vld [vmem:[#allocation2 + $0x28] sm:$0xf]
    %v222 = vld [vmem:[#allocation2 + $0x2c] sm:$0xf]
    %v223 = vld [vmem:[#allocation2 + $0x30] sm:$0xf]
    %v224 = vld [vmem:[#allocation2 + $0x34] sm:$0xf]
    %v225 = vld [vmem:[#allocation2 + $0x38] sm:$0xf]
    %v226 = vld [vmem:[#allocation2 + $0x3c] sm:$0xf]
    %v227 = vld [vmem:[#allocation2 + $0x40] sm:$0xf]
    %v228 = vld [vmem:[#allocation2 + $0x44] sm:$0xf]
    %v229 = vld [vmem:[#allocation2 + $0x48] sm:$0xf]
    %v230 = vld [vmem:[#allocation2 + $0x4c] sm:$0xf]
    %v231 = vld [vmem:[#allocation2 + $0x50] sm:$0xf]
    %v232 = vld [vmem:[#allocation2 + $0x54] sm:$0xf]
    %v233 = vld [vmem:[#allocation2 + $0x58] sm:$0xf]
    %v234 = vld [vmem:[#allocation2 + $0x5c] sm:$0xf]
    %v235 = vld [vmem:[#allocation2 + $0x60] sm:$0xf]
    %v236 = vld [vmem:[#allocation2 + $0x64] sm:$0xf]
    %v237 = vld [vmem:[#allocation2 + $0x68] sm:$0xf]
    %v238 = vld [vmem:[#allocation2 + $0x6c] sm:$0xf]
    %v239 = vld [vmem:[#allocation2 + $0x70] sm:$0xf]
    %v240 = vld [vmem:[#allocation2 + $0x74] sm:$0xf]
    %v241 = vld [vmem:[#allocation2 + $0x78] sm:$0xf]
    %v242 = vld [vmem:[#allocation2 + $0x7c] sm:$0xf]
    %v243 = vld [vmem:[#allocation2 + $0x80] sm:$0xf]
    %v244 = vld [vmem:[#allocation2 + $0x84] sm:$0xf]
    %v245 = vld [vmem:[#allocation2 + $0x88] sm:$0xf]
    %v246 = vld [vmem:[#allocation2 + $0x8c] sm:$0xf]
    %v247 = vld [vmem:[#allocation2 + $0x90] sm:$0xf]
    %v248 = vld [vmem:[#allocation2 + $0x94] sm:$0xf]
    %v249 = vld [vmem:[#allocation2 + $0x98] sm:$0xf]
    %v250 = vld [vmem:[#allocation2 + $0x9c] sm:$0xf]
    %v251 = vld [vmem:[#allocation2 + $0xa0] sm:$0xf]
    %v252 = vld [vmem:[#allocation2 + $0xa4] sm:$0xf]
    %v253 = vld [vmem:[#allocation2 + $0xa8] sm:$0xf]
    %v254 = vld [vmem:[#allocation2 + $0xac] sm:$0xf]
    %v255 = vld [vmem:[#allocation2 + $0xb0] sm:$0xf]
    %v256 = vld [vmem:[#allocation2 + $0xb4] sm:$0xf]
    %v257 = vld [vmem:[#allocation2 + $0xb8] sm:$0xf]
    %v258 = vld [vmem:[#allocation2 + $0xbc] sm:$0xf]
    %v259 = vld [vmem:[%s4] sm:$0x1]
    %v261 = vlaneseq
    %v262 = vshrl.u32 %v261, 7
    %v263 = vsub.s32 0, %v262
    %v264 = vrot.slane %v259, %v263
    %v314 = vunpack.c.l.b16 %v211
    %v315 = vunpack.c.l.b16 %v212
    %v316 = vunpack.c.l.b16 %v213
    %v317 = vunpack.c.l.b16 %v214
    %v318 = vunpack.c.l.b16 %v215
    %v319 = vunpack.c.l.b16 %v216
    %v320 = vunpack.c.l.b16 %v217
    %v321 = vunpack.c.l.b16 %v218
    %v322 = vunpack.c.l.b16 %v219
    %v323 = vunpack.c.l.b16 %v220
    %v324 = vunpack.c.l.b16 %v221
    %v325 = vunpack.c.l.b16 %v222
    %v326 = vunpack.c.l.b16 %v223
    %v327 = vunpack.c.l.b16 %v224
    %v328 = vunpack.c.l.b16 %v225
    %v329 = vunpack.c.l.b16 %v226
    %v330 = vunpack.c.l.b16 %v227
    %v331 = vunpack.c.l.b16 %v228
    %v332 = vunpack.c.l.b16 %v229
    %v333 = vunpack.c.l.b16 %v230
    %v334 = vunpack.c.l.b16 %v231
    %v335 = vunpack.c.l.b16 %v232
    %v336 = vunpack.c.l.b16 %v233
    %v337 = vunpack.c.l.b16 %v234
    %v338 = vunpack.c.l.b16 %v235
    %v339 = vunpack.c.l.b16 %v236
    %v340 = vunpack.c.l.b16 %v237
    %v341 = vunpack.c.l.b16 %v238
    %v342 = vunpack.c.l.b16 %v239
    %v343 = vunpack.c.l.b16 %v240
    %v344 = vunpack.c.l.b16 %v241
    %v345 = vunpack.c.l.b16 %v242
    %v346 = vunpack.c.l.b16 %v243
    %v347 = vunpack.c.l.b16 %v244
    %v348 = vunpack.c.l.b16 %v245
    %v349 = vunpack.c.l.b16 %v246
    %v350 = vunpack.c.l.b16 %v247
    %v351 = vunpack.c.l.b16 %v248
    %v352 = vunpack.c.l.b16 %v249
    %v353 = vunpack.c.l.b16 %v250
    %v354 = vunpack.c.l.b16 %v251
    %v355 = vunpack.c.l.b16 %v252
    %v356 = vunpack.c.l.b16 %v253
    %v357 = vunpack.c.l.b16 %v254
    %v358 = vunpack.c.l.b16 %v255
    %v359 = vunpack.c.l.b16 %v256
    %v360 = vunpack.c.l.b16 %v257
    %v361 = vunpack.c.l.b16 %v258
    %v362 = vpack.c.b16 %v315, %v314
    %v363 = vpack.c.b16 %v317, %v316
    %v364 = vpack.c.b16 %v319, %v318
    %v365 = vpack.c.b16 %v321, %v320
    %v366 = vpack.c.b16 %v323, %v322
    %v367 = vpack.c.b16 %v325, %v324
    %v368 = vpack.c.b16 %v327, %v326
    %v369 = vpack.c.b16 %v329, %v328
    %v370 = vpack.c.b16 %v331, %v330
    %v371 = vpack.c.b16 %v333, %v332
    %v372 = vpack.c.b16 %v335, %v334
    %v373 = vpack.c.b16 %v337, %v336
    %v374 = vpack.c.b16 %v339, %v338
    %v375 = vpack.c.b16 %v341, %v340
    %v376 = vpack.c.b16 %v343, %v342
    %v377 = vpack.c.b16 %v345, %v344
    %v378 = vpack.c.b16 %v347, %v346
    %v379 = vpack.c.b16 %v349, %v348
    %v380 = vpack.c.b16 %v351, %v350
    %v381 = vpack.c.b16 %v353, %v352
    %v382 = vpack.c.b16 %v355, %v354
    %v383 = vpack.c.b16 %v357, %v356
    %v384 = vpack.c.b16 %v359, %v358
    %v385 = vpack.c.b16 %v361, %v360
    %410 = vmatprep.subr.bf16.mxu0 0
    %411 = vmatpush1.bf16.msra.mxu0 %v369
    %412 = vmatprep.subr.bf16.mxu0 0
    %413 = vmatpush1.bf16.msra.mxu0 %v368
    %414 = vmatprep.subr.bf16.mxu0 0
    %415 = vmatpush1.bf16.msra.mxu0 %v367
    %416 = vmatprep.subr.bf16.mxu0 0
    %417 = vmatpush1.bf16.msra.mxu0 %v366
    %418 = vmatprep.subr.bf16.mxu0 0
    %419 = vmatpush1.bf16.msra.mxu0 %v365
    %420 = vmatprep.subr.bf16.mxu0 0
    %421 = vmatpush1.bf16.msra.mxu0 %v364
    %422 = vmatprep.subr.bf16.mxu0 0
    %423 = vmatpush1.bf16.msra.mxu0 %v363
    %424 = vmatprep.subr.bf16.mxu0 0
    %425 = vmatpush1.bf16.msra.mxu0 %v362
    %426 = vmatprep.subr.bf16.mxu0 0
    %427 = vmatpush2.bf16.msra.mxu0 %v377
    %428 = vmatprep.subr.bf16.mxu0 0
    %429 = vmatpush2.bf16.msra.mxu0 %v376
    %430 = vmatprep.subr.bf16.mxu0 0
    %431 = vmatpush2.bf16.msra.mxu0 %v375
    %432 = vmatprep.subr.bf16.mxu0 0
    %433 = vmatpush2.bf16.msra.mxu0 %v374
    %434 = vmatprep.subr.bf16.mxu0 0
    %435 = vmatpush2.bf16.msra.mxu0 %v373
    %436 = vmatprep.subr.bf16.mxu0 0
    %437 = vmatpush2.bf16.msra.mxu0 %v372
    %438 = vmatprep.subr.bf16.mxu0 0
    %439 = vmatpush2.bf16.msra.mxu0 %v371
    %440 = vmatprep.subr.bf16.mxu0 0
    %441 = vmatpush2.bf16.msra.mxu0 %v370
    %442 = vmatprep.mubr.bf16.mxu0 %v209
    %443 = vmatmul.mubr.bf16.gmra.mxu0 %v208
    %v444 = vpop.f32.mrf.mxu0
    %v445 = vadd.f32 %v264, %v444
    %v446 = vpop.f32.mrf.mxu0
    %v447 = vpop.f32.mrf.mxu0
    %v448 = vadd.f32 %v264, %v447
    %v449 = vpop.f32.mrf.mxu0
    %450 = vdwg.mxu0
    %451 = vmatprep.subr.bf16.mxu0 0
    %452 = vmatpush1.bf16.msra.mxu0 %v385
    %453 = vmatprep.subr.bf16.mxu0 0
    %454 = vmatpush1.bf16.msra.mxu0 %v384
    %455 = vmatprep.subr.bf16.mxu0 0
    %456 = vmatpush1.bf16.msra.mxu0 %v383
    %457 = vmatprep.subr.bf16.mxu0 0
    %458 = vmatpush1.bf16.msra.mxu0 %v382
    %459 = vmatprep.subr.bf16.mxu0 0
    %460 = vmatpush1.bf16.msra.mxu0 %v381
    %461 = vmatprep.subr.bf16.mxu0 0
    %462 = vmatpush1.bf16.msra.mxu0 %v380
    %463 = vmatprep.subr.bf16.mxu0 0
    %464 = vmatpush1.bf16.msra.mxu0 %v379
    %465 = vmatprep.subr.bf16.mxu0 0
    %466 = vmatpush1.bf16.msra.mxu0 %v378
    %467 = vmatprep.subr.bf16.mxu0 0
    %468 = vmatpush2.bf16.msra.mxu0 0
    %469 = vmatprep.subr.bf16.mxu0 0
    %470 = vmatpush2.bf16.msra.mxu0 0
    %471 = vmatprep.subr.bf16.mxu0 0
    %472 = vmatpush2.bf16.msra.mxu0 0
    %473 = vmatprep.subr.bf16.mxu0 0
    %474 = vmatpush2.bf16.msra.mxu0 0
    %475 = vmatprep.subr.bf16.mxu0 0
    %476 = vmatpush2.bf16.msra.mxu0 0
    %477 = vmatprep.subr.bf16.mxu0 0
    %478 = vmatpush2.bf16.msra.mxu0 0
    %479 = vmatprep.subr.bf16.mxu0 0
    %480 = vmatpush2.bf16.msra.mxu0 0
    %481 = vmatprep.subr.bf16.mxu0 0
    %482 = vmatpush2.bf16.msra.mxu0 0
    %483 = vmatprep.mubr.bf16.mxu0 0
    %484 = vmatmul.mubr.bf16.gmra.mxu0 %v210
    %v485 = vpop.f32.mrf.mxu0
    %v486 = vadd.f32 %v445, %v485
    %v487 = vpop.f32.mrf.mxu0
    %v488 = vpop.f32.mrf.mxu0
    %v489 = vadd.f32 %v448, %v488
    %v490 = vpop.f32.mrf.mxu0
    %491 = vdwg.mxu0
    %vm492 = vcmp.gt.f32.partialorder %v486, 0.0
    %vm493 = vcmp.gt.f32.partialorder %v489, 0.0
    %v494 = vmul.f32 %v486, 0.2
    %v495 = vmul.f32 %v489, 0.2
    %v496 = vsel %vm492, %v486, %v494
    %v497 = vsel %vm493, %v489, %v495
    %v498 = vpack.c.bf16 %v497, %v496
    %v499 = vld [vmem:[%s5] sm:$0xf]
    %v500 = vld [vmem:[%s5 + $0x4] sm:$0xf]
    %v501 = vld [vmem:[%s5 + $0x8] sm:$0xf]
    %v502 = vld [vmem:[%s5 + $0xc] sm:$0xf]
    %v503 = vld [vmem:[%s5 + $0x10] sm:$0xf]
    %v504 = vld [vmem:[%s5 + $0x14] sm:$0xf]
    %v505 = vld [vmem:[%s5 + $0x18] sm:$0xf]
    %v506 = vld [vmem:[%s5 + $0x1c] sm:$0xf]
    %v507 = vld [vmem:[%s5 + $0x20] sm:$0xf]
    %v508 = vld [vmem:[%s5 + $0x24] sm:$0xf]
    %v509 = vld [vmem:[%s5 + $0x28] sm:$0xf]
    %v510 = vld [vmem:[%s5 + $0x2c] sm:$0xf]
    %v511 = vld [vmem:[%s5 + $0x30] sm:$0xf]
    %v512 = vld [vmem:[%s5 + $0x34] sm:$0xf]
    %v513 = vld [vmem:[%s5 + $0x38] sm:$0xf]
    %v514 = vld [vmem:[%s5 + $0x3c] sm:$0xf]
    %v515 = vld [vmem:[%s6] sm:$0x1]
    %v517 = vlaneseq
    %v518 = vshrl.u32 %v517, 7
    %v519 = vsub.s32 0, %v518
    %v520 = vrot.slane %v515, %v519
    %v538 = vunpack.c.l.b16 %v499
    %v539 = vunpack.c.l.b16 %v500
    %v540 = vunpack.c.l.b16 %v501
    %v541 = vunpack.c.l.b16 %v502
    %v542 = vunpack.c.l.b16 %v503
    %v543 = vunpack.c.l.b16 %v504
    %v544 = vunpack.c.l.b16 %v505
    %v545 = vunpack.c.l.b16 %v506
    %v546 = vunpack.c.l.b16 %v507
    %v547 = vunpack.c.l.b16 %v508
    %v548 = vunpack.c.l.b16 %v509
    %v549 = vunpack.c.l.b16 %v510
    %v550 = vunpack.c.l.b16 %v511
    %v551 = vunpack.c.l.b16 %v512
    %v552 = vunpack.c.l.b16 %v513
    %v553 = vunpack.c.l.b16 %v514
    %v554 = vpack.c.b16 %v539, %v538
    %v555 = vpack.c.b16 %v541, %v540
    %v556 = vpack.c.b16 %v543, %v542
    %v557 = vpack.c.b16 %v545, %v544
    %v558 = vpack.c.b16 %v547, %v546
    %v559 = vpack.c.b16 %v549, %v548
    %v560 = vpack.c.b16 %v551, %v550
    %v561 = vpack.c.b16 %v553, %v552
    %570 = vmatprep.subr.bf16.mxu0 0
    %571 = vmatpush1.bf16.msra.mxu0 %v561
    %572 = vmatprep.subr.bf16.mxu0 0
    %573 = vmatpush1.bf16.msra.mxu0 %v560
    %574 = vmatprep.subr.bf16.mxu0 0
    %575 = vmatpush1.bf16.msra.mxu0 %v559
    %576 = vmatprep.subr.bf16.mxu0 0
    %577 = vmatpush1.bf16.msra.mxu0 %v558
    %578 = vmatprep.subr.bf16.mxu0 0
    %579 = vmatpush1.bf16.msra.mxu0 %v557
    %580 = vmatprep.subr.bf16.mxu0 0
    %581 = vmatpush1.bf16.msra.mxu0 %v556
    %582 = vmatprep.subr.bf16.mxu0 0
    %583 = vmatpush1.bf16.msra.mxu0 %v555
    %584 = vmatprep.subr.bf16.mxu0 0
    %585 = vmatpush1.bf16.msra.mxu0 %v554
    %586 = vmatprep.subr.bf16.mxu0 0
    %587 = vmatpush2.bf16.msra.mxu0 0
    %588 = vmatprep.subr.bf16.mxu0 0
    %589 = vmatpush2.bf16.msra.mxu0 0
    %590 = vmatprep.subr.bf16.mxu0 0
    %591 = vmatpush2.bf16.msra.mxu0 0
    %592 = vmatprep.subr.bf16.mxu0 0
    %593 = vmatpush2.bf16.msra.mxu0 0
    %594 = vmatprep.subr.bf16.mxu0 0
    %595 = vmatpush2.bf16.msra.mxu0 0
    %596 = vmatprep.subr.bf16.mxu0 0
    %597 = vmatpush2.bf16.msra.mxu0 0
    %598 = vmatprep.subr.bf16.mxu0 0
    %599 = vmatpush2.bf16.msra.mxu0 0
    %600 = vmatprep.subr.bf16.mxu0 0
    %601 = vmatpush2.bf16.msra.mxu0 0
    %602 = vmatprep.mubr.bf16.mxu0 0
    %603 = vmatmul.mubr.bf16.gmra.mxu0 %v498
    %v604 = vpop.f32.mrf.mxu0
    %v605 = vadd.f32 %v520, %v604
    %v606 = vpop.f32.mrf.mxu0
    %v607 = vpop.f32.mrf.mxu0
    %v608 = vadd.f32 %v520, %v607
    %v609 = vpop.f32.mrf.mxu0
    %610 = vdwg.mxu0
    %vm611 = vcmask 64512
    %612 = vst.msk [vmem:[#allocation5] sm:$0xff] %vm611, %v605
    %613 = vst.msk [vmem:[#allocation5 + $0x8] sm:$0xff] %vm611, %v608
    // Predicated region
    $region34: #{flatten_head.1} parent=1 // pred_check
      _
    $region35: #{flatten_head.1} parent=1 // pred_check_branch
      %615 = sbr.rel (0) target = $region37
    $region36: #{flatten_head.1} parent=1 // pred_region
      %s617 = ssub.s32 256, 256
      %618 = vsyncadd [#allocation4], %s617
      %s619 = sshll.u32 [#allocation5], 4
      %s620 = int_to_ptr.vmem [resolvable:$true] %s619
      %625 = dma.vmem_to_hbm [thread:$0]  %s620, 256, %s7, [#allocation4], 128, 128, 8
    $region37: #{flatten_head.1} parent=1 // pred_fallthru
      _
    // Predicated region
    $region38: #{flatten_head.1} parent=1 // pred_check
      _
    $region39: #{flatten_head.1} parent=1 // pred_check_branch
      %627 = sbr.rel (0) target = $region41
    $region40: #{flatten_head.1} parent=1 // pred_region
      %628 = dma.done [#allocation4], 256
    $region41: #{flatten_head.1} parent=1 // pred_fallthru
      _
    %629 = vsyncpa [#allocation3], 1
    %630 = vsyncpa [#allocation4], 1

</llo_original>
